<compile_context>
chip_gen: v6e
topology: v6e:2x2x1
jax: 0.10.0
libtpu: 0.0.40
codegen_flags: <defaults>
</compile_context>

<pallas_src>
import jax
import jax.numpy as jnp
from jax.experimental import pallas as pl
from jax.experimental.pallas import tpu as pltpu


def _conv1x1_kernel(x_ref, w_ref, o_ref):
    # x_ref: (BN, Cin, TL)  -- BN images, lane axis = contiguous spatial (H*W)
    # w_ref: (Cout, Cin)    -- full weight, resident across the whole grid
    # o_ref: (BN, Cout, TL) -- lane-dense output tile
    w = w_ref[...]
    for b in range(x_ref.shape[0]):  # static unroll over the image block (bn small)
        o_ref[b] = jnp.dot(
            w, x_ref[b], preferred_element_type=jnp.float32
        ).astype(o_ref.dtype)


def _vmem_budgets():
    """Generation-aware (per-step block byte budget, scoped-VMEM limit)."""
    try:
        cap = pltpu.get_tpu_info().vmem_capacity_bytes
    except Exception:
        cap = 64 * 1024 * 1024  # conservative (v7x-class) fallback
    if cap <= 64 * 1024 * 1024:
        # v7x-class: 64 MiB physical per TC.  ~16 MiB steps cut the ~0.35 us
        # per-step overhead to <10% at 3.2 TB/s; 2x double-buffered blocks plus
        # weight fit under a 48 MiB scoped limit with headroom.
        block_budget = 16 * 1024 * 1024
    else:
        # v5e / v6e: 128 MiB physical.  12 MiB steps are already ~90%+
        # overhead-free at 0.8-1.4 TB/s HBM bandwidth.
        block_budget = 12 * 1024 * 1024
    vmem_limit = min(48 * 1024 * 1024, (cap * 3) // 4)
    return block_budget, vmem_limit


def net_lin_layer_forward(x_nchw, weight, *, max_batch_block=16):
    """NetLinLayer forward: 1x1 Conv2d, stride 1, no padding, no bias.

    x_nchw : (N, Cin, H, W)
    weight : (Cout, Cin, 1, 1)   -- PyTorch Conv2d weight layout
    returns: (N, Cout, H, W)
    """
    # TODO(synk): use_dropout=True training-mode path (nn.Dropout) not
    # implemented; eval-mode / use_dropout=False behavior is what this
    # kernel reproduces.
    N, Cin, H, W = x_nchw.shape
    Cout = weight.shape[0]
    L = H * W

    # Free reshapes only -- no transposes, no extra HBM traffic.
    x3d = x_nchw.reshape(N, Cin, L)
    w2d = weight.reshape(Cout, Cin)

    itemsize = jnp.dtype(x_nchw.dtype).itemsize
    block_budget, vmem_limit = _vmem_budgets()

    # Spatial (lane) tile: multiple of 128, sized so one step's x + out block
    # stays within the generation-aware byte budget.
    lane_cover = pl.cdiv(L, 128) * 128
    chan_bytes = (Cin + Cout) * itemsize
    budget_lanes = max(128, ((block_budget // max(chan_bytes, 1)) // 128) * 128)
    tl = max(128, min(budget_lanes, lane_cover))

    # Small feature maps: whole spatial extent fits in one tile -> batch
    # multiple images per grid step to keep per-step DMAs at a few MiB.
    if tl >= lane_cover:
        per_image_bytes = max(chan_bytes * lane_cover, 1)
        bn = max(1, min(N, block_budget // per_image_bytes, max_batch_block))
    else:
        bn = 1

    grid = (pl.cdiv(N, bn), pl.cdiv(L, tl))  # partial trailing blocks handled by Pallas

    cost = pl.CostEstimate(
        flops=2 * N * L * Cin * Cout,
        transcendentals=0,
        bytes_accessed=(
            N * Cin * L * itemsize                               # x read
            + Cout * Cin * jnp.dtype(weight.dtype).itemsize      # w read
            + N * Cout * L * itemsize                            # y write
        ),
    )

    y3d = pl.pallas_call(
        _conv1x1_kernel,
        out_shape=jax.ShapeDtypeStruct((N, Cout, L), x_nchw.dtype),
        grid=grid,
        in_specs=[
            # (bn, Cin, TL): Cin equals the full dim, TL multiple of 128
            # -> lane-dense loads.
            pl.BlockSpec((bn, Cin, tl), lambda n, l: (n, 0, l)),
            # Tiny weight: constant index_map -> DMA'd once, stays resident.
            pl.BlockSpec((Cout, Cin), lambda n, l: (0, 0)),
        ],
        # Lane-dense output tile -> unmasked full-width vst.
        out_specs=pl.BlockSpec((bn, Cout, tl), lambda n, l: (n, 0, l)),
        compiler_params=pltpu.CompilerParams(
            # Both axes are independent.  TODO(synk): on v7x verify via xprof
            # that both TensorCores are used; if one is idle, switch the
            # leading axis to pltpu.CORE_PARALLEL.
            dimension_semantics=("parallel", "parallel"),
            vmem_limit_bytes=vmem_limit,
        ),
        cost_estimate=cost,
    )(x3d, w2d)

    # Free reshape back to NCHW.
    return y3d.reshape(N, Cout, H, W)


if __name__ == "__main__":
    key = jax.random.PRNGKey(0)
    kx, kw, kx2, kw2 = jax.random.split(key, 4)

    # Case 1: NetLinLayer default (chn_out=1), 16x16 feature map.
    N, Cin, H, W = 2, 4, 16, 16
    Cout = 1
    x = jax.random.normal(kx, (N, Cin, H, W), dtype=jnp.float32)
    weight = jax.random.normal(kw, (Cout, Cin, 1, 1), dtype=jnp.float32) * 0.1

    out = jax.block_until_ready(net_lin_layer_forward(x, weight))
    ref = jnp.einsum("nchw,oc->nohw", x, weight.reshape(Cout, Cin))
    assert out.shape == (N, Cout, H, W)
    assert jnp.allclose(out, ref, atol=1e-5, rtol=1e-5)

    # Case 2: non-128-multiple spatial size, multi-image block (bn > 1),
    # multi-channel output.
    N2, Cin2, H2, W2, Cout2 = 3, 8, 10, 9, 3
    x2 = jax.random.normal(kx2, (N2, Cin2, H2, W2), dtype=jnp.float32)
    w2 = jax.random.normal(kw2, (Cout2, Cin2, 1, 1), dtype=jnp.float32) * 0.1
    out2 = jax.block_until_ready(net_lin_layer_forward(x2, w2))
    ref2 = jnp.einsum("nchw,oc->nohw", x2, w2.reshape(Cout2, Cin2))
    assert out2.shape == (N2, Cout2, H2, W2)
    assert jnp.allclose(out2, ref2, atol=1e-5, rtol=1e-5)

    print("KERNEL_OK")
</pallas_src>

<mosaic_0001>
module attributes {stable_mosaic.version = 11 : i64} {
  func.func @_conv1x1_kernel(%arg0: i32, %arg1: i32, %arg2: memref<2x4x256xf32, #tpu.memory_space<vmem>>, %arg3: memref<1x4xf32, #tpu.memory_space<vmem>>, %arg4: memref<2x1x256xf32, #tpu.memory_space<vmem>>) attributes {dimension_semantics = [#tpu.dimension_semantics<parallel>, #tpu.dimension_semantics<parallel>], iteration_bounds = array<i64: 1, 1>, scalar_prefetch = 0 : i64, scratch_operands = 0 : i64, tpu.core_type = #tpu.core_type<tc>, window_params = [{transform_indices = @transform_0, window_bounds = array<i64: 2, 4, 256>}, {pipeline_mode = #tpu.pipeline_mode<synchronous>, transform_indices = @transform_1, window_bounds = array<i64: 1, 4>}, {transform_indices = @transform_2, window_bounds = array<i64: 2, 1, 256>}]} {
    %c0 = arith.constant 0 : index
    %c0_0 = arith.constant 0 : index
    %0 = vector.load %arg3[%c0, %c0_0] : memref<1x4xf32, #tpu.memory_space<vmem>>, vector<1x4xf32>
    %c0_1 = arith.constant 0 : index
    %c0_2 = arith.constant 0 : index
    %c0_3 = arith.constant 0 : index
    %1 = vector.load %arg2[%c0_1, %c0_2, %c0_3] : memref<2x4x256xf32, #tpu.memory_space<vmem>>, vector<1x4x256xf32>
    %2 = vector.shape_cast %1 : vector<1x4x256xf32> to vector<4x256xf32>
    %cst = arith.constant dense<0.000000e+00> : vector<1x256xf32>
    %3 = tpu.matmul %0, %2, %cst {dimension_numbers = #tpu.dot_dimension_numbers<[1], [0], [0], [1], [0, 0, 1, 1], [], []>} : vector<1x4xf32>, vector<4x256xf32>, vector<1x256xf32> -> vector<1x256xf32>
    %c0_4 = arith.constant 0 : index
    %c0_5 = arith.constant 0 : index
    %c0_6 = arith.constant 0 : index
    %4 = vector.load %arg4[%c0_4, %c0_5, %c0_6] : memref<2x1x256xf32, #tpu.memory_space<vmem>>, vector<1x1x256xf32>
    %5 = vector.shape_cast %4 : vector<1x1x256xf32> to vector<1x256xf32>
    %6 = vector.shape_cast %3 : vector<1x256xf32> to vector<1x1x256xf32>
    tpu.vector_store %arg4[%c0_4, %c0_5, %c0_6], %6 {strides = array<i32>} : memref<2x1x256xf32, #tpu.memory_space<vmem>>, vector<1x1x256xf32>,
    %c1 = arith.constant 1 : index
    %c0_7 = arith.constant 0 : index
    %c0_8 = arith.constant 0 : index
    %7 = vector.load %arg2[%c1, %c0_7, %c0_8] : memref<2x4x256xf32, #tpu.memory_space<vmem>>, vector<1x4x256xf32>
    %8 = vector.shape_cast %7 : vector<1x4x256xf32> to vector<4x256xf32>
    %cst_9 = arith.constant dense<0.000000e+00> : vector<1x256xf32>
    %9 = tpu.matmul %0, %8, %cst_9 {dimension_numbers = #tpu.dot_dimension_numbers<[1], [0], [0], [1], [0, 0, 1, 1], [], []>} : vector<1x4xf32>, vector<4x256xf32>, vector<1x256xf32> -> vector<1x256xf32>
    %c1_10 = arith.constant 1 : index
    %c0_11 = arith.constant 0 : index
    %c0_12 = arith.constant 0 : index
    %10 = vector.load %arg4[%c1_10, %c0_11, %c0_12] : memref<2x1x256xf32, #tpu.memory_space<vmem>>, vector<1x1x256xf32>
    %11 = vector.shape_cast %10 : vector<1x1x256xf32> to vector<1x256xf32>
    %12 = vector.shape_cast %9 : vector<1x256xf32> to vector<1x1x256xf32>
    tpu.vector_store %arg4[%c1_10, %c0_11, %c0_12], %12 {strides = array<i32>} : memref<2x1x256xf32, #tpu.memory_space<vmem>>, vector<1x1x256xf32>,
    return
  }
  func.func @transform_0(%arg0: i32, %arg1: i32) -> (i32, i32, i32) {
    %c0_i32 = arith.constant 0 : i32
    %c0_i32_0 = arith.constant 0 : i32
    return %arg0, %c0_i32, %arg1 : i32, i32, i32
  }
  func.func @transform_1(%arg0: i32, %arg1: i32) -> (i32, i32) {
    %c0_i32 = arith.constant 0 : i32
    %c0_i32_0 = arith.constant 0 : i32
    %c0_i32_1 = arith.constant 0 : i32
    return %c0_i32, %c0_i32_0 : i32, i32
  }
  func.func @transform_2(%arg0: i32, %arg1: i32) -> (i32, i32, i32) {
    %c0_i32 = arith.constant 0 : i32
    %c0_i32_0 = arith.constant 0 : i32
    return %arg0, %c0_i32, %arg1 : i32, i32, i32
  }
}

</mosaic_0001>

<llo_original>
// kernel: tpu_custom_call.1
$region0: #{tpu_custom_call.1}
  #allocation0 [shape = 'u32[]', space=smem, size = 0x4, offset = 0x4, fixed_abs, tag = 'smem constant byte address 0x4 - core index']
  #allocation1 [shape = 'u32[144,128]{1,0:T(1,128)}', space=vmem, size = 0x12000, scoped, tag = 'internal scratch']
  %s0 = inlined_call_operand.hbm [shape: f32[2,4,256], index: 0, kind: input, shape index: {}]
  %s1 = inlined_call_operand.vmem [shape: f32[1,4], index: 1, kind: input, shape index: {}]
  %s2 = inlined_call_operand.hbm [shape: f32[2,1,256], index: 2, kind: output, shape index: {}]
  %s3 = sld [smem:[#allocation0]]
  $region22: #{tpu_custom_call.1} parent=0
    _
  %s5 = ssub.s32 1, %s3
  %s6 = scalar_select 0, %s5, %s3
  $region1: #{tpu_custom_call.1} parent=0
    #allocation2 [shape = 'u8[8192]{0}', space=vmem, size = 0x2000, scoped, tag = 'input window, operand 0, single buffered']
    #allocation3 [shape = 's32[1]{0}', space=sflag, size = 0x4, scoped, tag = 'scoped memory for tpu_custom_call.1']
    #allocation4 [shape = 's32[1]{0}', space=sflag, size = 0x4, scoped, tag = 'scoped memory for tpu_custom_call.1']
    #allocation5 [shape = 'u8[2048]{0}', space=vmem, size = 0x800, scoped, tag = 'output window, operand 0, single buffered']
    %7 = vsyncpa [#allocation3], 0
    %8 = vsyncpa [#allocation4], 0
    // Predicated region
    $region2: #{tpu_custom_call.1} parent=1 // pred_check
      _
    $region3: #{tpu_custom_call.1} parent=1 // pred_check_branch
      %10 = sbr.rel (0) target = $region5
    $region4: #{tpu_custom_call.1} parent=1 // pred_region
      %s12 = ssub.s32 256, 256
      %13 = vsyncadd [#allocation3], %s12
      %s14 = sshll.u32 [#allocation2], 4
      %s15 = int_to_ptr.vmem [resolvable:$true] %s14
      %20 = dma.hbm_to_vmem [thread:$0]  %s0, 256, %s15, [#allocation3], 128, 128, 8
    $region5: #{tpu_custom_call.1} parent=1 // pred_fallthru
      _
    // Predicated region
    $region6: #{tpu_custom_call.1} parent=1 // pred_check
      _
    $region7: #{tpu_custom_call.1} parent=1 // pred_check_branch
      %22 = sbr.rel (0) target = $region9
    $region8: #{tpu_custom_call.1} parent=1 // pred_region
      _
    $region9: #{tpu_custom_call.1} parent=1 // pred_fallthru
      _
    // Predicated region
    $region10: #{tpu_custom_call.1} parent=1 // pred_check
      _
    $region11: #{tpu_custom_call.1} parent=1 // pred_check_branch
      %24 = sbr.rel (0) target = $region13
    $region12: #{tpu_custom_call.1} parent=1 // pred_region
      %25 = dma.done [#allocation3], 256
    $region13: #{tpu_custom_call.1} parent=1 // pred_fallthru
      _
    %v26 = vld [vmem:[%s1] sm:$0x1]
    %v27 = vld [vmem:[#allocation2] sm:$0xff]
    %v29 = vcombine.high %v27, %v27
    %vm30 = vcmask 31744
    %v32 = vsel %vm30, %v26, 0
    %vm34 = vcmask 1043456
    %v35 = vsel %vm34, %v27, 0
    %v37 = vsel %vm34, %v29, 0
    %39 = vmatprep.subr.mxu0 0.0
    %40 = vmatpush1.msra.mxu0 0.0
    %41 = vmatprep.subr.mxu0 0.0
    %42 = vmatpush1.msra.mxu0 0.0
    %43 = vmatprep.subr.mxu0 0.0
    %44 = vmatpush1.msra.mxu0 0.0
    %45 = vmatprep.subr.mxu0 0.0
    %46 = vmatpush1.msra.mxu0 0.0
    %47 = vmatprep.subr.mxu0 0.0
    %48 = vmatpush1.msra.mxu0 0.0
    %49 = vmatprep.subr.mxu0 0.0
    %50 = vmatpush1.msra.mxu0 0.0
    %51 = vmatprep.subr.mxu0 0.0
    %52 = vmatpush1.msra.mxu0 0.0
    %53 = vmatprep.subr.mxu0 0.0
    %54 = vmatpush1.msra.mxu0 0.0
    %55 = vmatprep.subr.mxu0 0.0
    %56 = vmatpush1.msra.mxu0 0.0
    %57 = vmatprep.subr.mxu0 0.0
    %58 = vmatpush1.msra.mxu0 0.0
    %59 = vmatprep.subr.mxu0 0.0
    %60 = vmatpush1.msra.mxu0 0.0
    %61 = vmatprep.subr.mxu0 0.0
    %62 = vmatpush1.msra.mxu0 0.0
    %63 = vmatprep.subr.mxu0 0.0
    %64 = vmatpush1.msra.mxu0 0.0
    %65 = vmatprep.subr.mxu0 0.0
    %66 = vmatpush1.msra.mxu0 0.0
    %67 = vmatprep.subr.mxu0 0.0
    %68 = vmatpush1.msra.mxu0 0.0
    %69 = vmatprep.subr.mxu0 %v37
    %70 = vmatpush1.msra.mxu0 %v35
    %71 = vmatprep.subr.mxu0 0.0
    %72 = vmatpush2.msra.mxu0 0.0
    %73 = vmatprep.subr.mxu0 0.0
    %74 = vmatpush2.msra.mxu0 0.0
    %75 = vmatprep.subr.mxu0 0.0
    %76 = vmatpush2.msra.mxu0 0.0
    %77 = vmatprep.subr.mxu0 0.0
    %78 = vmatpush2.msra.mxu0 0.0
    %79 = vmatprep.subr.mxu0 0.0
    %80 = vmatpush2.msra.mxu0 0.0
    %81 = vmatprep.subr.mxu0 0.0
    %82 = vmatpush2.msra.mxu0 0.0
    %83 = vmatprep.subr.mxu0 0.0
    %84 = vmatpush2.msra.mxu0 0.0
    %85 = vmatprep.subr.mxu0 0.0
    %86 = vmatpush2.msra.mxu0 0.0
    %87 = vmatprep.subr.mxu0 0.0
    %88 = vmatpush2.msra.mxu0 0.0
    %89 = vmatprep.subr.mxu0 0.0
    %90 = vmatpush2.msra.mxu0 0.0
    %91 = vmatprep.subr.mxu0 0.0
    %92 = vmatpush2.msra.mxu0 0.0
    %93 = vmatprep.subr.mxu0 0.0
    %94 = vmatpush2.msra.mxu0 0.0
    %95 = vmatprep.subr.mxu0 0.0
    %96 = vmatpush2.msra.mxu0 0.0
    %97 = vmatprep.subr.mxu0 0.0
    %98 = vmatpush2.msra.mxu0 0.0
    %99 = vmatprep.subr.mxu0 0.0
    %100 = vmatpush2.msra.mxu0 0.0
    %101 = vmatprep.subr.mxu0 0.0
    %102 = vmatpush2.msra.mxu0 0.0
    %103 = vmatprep.mubr.f32.mxu0 0.0
    %104 = vmatmul.mubr.f32.gmra.mxu0 %v32
    %v105 = vpop.f32.mrf.mxu0
    %v106 = vadd.f32 0.0, %v105
    %v107 = vpop.f32.mrf.mxu0
    %v108 = vadd.f32 0.0, %v107
    %109 = vdwg.mxu0
    %v112 = vcombine.low %v106, %v108
    %v114 = vunpack.c.l.s4 1966171168
    %v115 = vunpack.c.0.s8 %v114
    %v116 = vlaneseq
    %v117 = vshrl.u32 %v116, 7
    %v118 = vsub.s32 %v115, %v117
    %v119 = vrot.slane %v112, %v118
    %v121 = vunpack.c.l.s4 1966171168
    %v122 = vunpack.c.0.s8 %v121
    %v123 = vlaneseq
    %v124 = vshrl.u32 %v123, 7
    %v125 = vsub.s32 %v122, %v124
    %v126 = vrot.slane %v119, %v125
    %v128 = vlaneseq
    %vm129 = vcmp.ge.s32.totalorder %v128, 0
    %vm130 = vcmp.lt.s32.totalorder %v128, 256
    %vm131 = vmand %vm129, %vm130
    %132 = vst.msk [vmem:[#allocation5] sm:$0x3] %vm131, %v126
    %s133 = scalar_lea.vmem [#allocation2], 8
    %v134 = vld [vmem:[%s133] sm:$0xff]
    %v136 = vcombine.high %v134, %v134
    %v137 = vsel %vm34, %v134, 0
    %v139 = vsel %vm34, %v136, 0
    %141 = vmatprep.subr.mxu0 0.0
    %142 = vmatpush1.msra.mxu0 0.0
    %143 = vmatprep.subr.mxu0 0.0
    %144 = vmatpush1.msra.mxu0 0.0
    %145 = vmatprep.subr.mxu0 0.0
    %146 = vmatpush1.msra.mxu0 0.0
    %147 = vmatprep.subr.mxu0 0.0
    %148 = vmatpush1.msra.mxu0 0.0
    %149 = vmatprep.subr.mxu0 0.0
    %150 = vmatpush1.msra.mxu0 0.0
    %151 = vmatprep.subr.mxu0 0.0
    %152 = vmatpush1.msra.mxu0 0.0
    %153 = vmatprep.subr.mxu0 0.0
    %154 = vmatpush1.msra.mxu0 0.0
    %155 = vmatprep.subr.mxu0 0.0
    %156 = vmatpush1.msra.mxu0 0.0
    %157 = vmatprep.subr.mxu0 0.0
    %158 = vmatpush1.msra.mxu0 0.0
    %159 = vmatprep.subr.mxu0 0.0
    %160 = vmatpush1.msra.mxu0 0.0
    %161 = vmatprep.subr.mxu0 0.0
    %162 = vmatpush1.msra.mxu0 0.0
    %163 = vmatprep.subr.mxu0 0.0
    %164 = vmatpush1.msra.mxu0 0.0
    %165 = vmatprep.subr.mxu0 0.0
    %166 = vmatpush1.msra.mxu0 0.0
    %167 = vmatprep.subr.mxu0 0.0
    %168 = vmatpush1.msra.mxu0 0.0
    %169 = vmatprep.subr.mxu0 0.0
    %170 = vmatpush1.msra.mxu0 0.0
    %171 = vmatprep.subr.mxu0 %v139
    %172 = vmatpush1.msra.mxu0 %v137
    %173 = vmatprep.subr.mxu0 0.0
    %174 = vmatpush2.msra.mxu0 0.0
    %175 = vmatprep.subr.mxu0 0.0
    %176 = vmatpush2.msra.mxu0 0.0
    %177 = vmatprep.subr.mxu0 0.0
    %178 = vmatpush2.msra.mxu0 0.0
    %179 = vmatprep.subr.mxu0 0.0
    %180 = vmatpush2.msra.mxu0 0.0
    %181 = vmatprep.subr.mxu0 0.0
    %182 = vmatpush2.msra.mxu0 0.0
    %183 = vmatprep.subr.mxu0 0.0
    %184 = vmatpush2.msra.mxu0 0.0
    %185 = vmatprep.subr.mxu0 0.0
    %186 = vmatpush2.msra.mxu0 0.0
    %187 = vmatprep.subr.mxu0 0.0
    %188 = vmatpush2.msra.mxu0 0.0
    %189 = vmatprep.subr.mxu0 0.0
    %190 = vmatpush2.msra.mxu0 0.0
    %191 = vmatprep.subr.mxu0 0.0
    %192 = vmatpush2.msra.mxu0 0.0
    %193 = vmatprep.subr.mxu0 0.0
    %194 = vmatpush2.msra.mxu0 0.0
    %195 = vmatprep.subr.mxu0 0.0
    %196 = vmatpush2.msra.mxu0 0.0
    %197 = vmatprep.subr.mxu0 0.0
    %198 = vmatpush2.msra.mxu0 0.0
    %199 = vmatprep.subr.mxu0 0.0
    %200 = vmatpush2.msra.mxu0 0.0
    %201 = vmatprep.subr.mxu0 0.0
    %202 = vmatpush2.msra.mxu0 0.0
    %203 = vmatprep.subr.mxu0 0.0
    %204 = vmatpush2.msra.mxu0 0.0
    %205 = vmatprep.mubr.f32.mxu0 0.0
    %206 = vmatmul.mubr.f32.gmra.mxu0 %v32
    %v207 = vpop.f32.mrf.mxu0
    %v208 = vadd.f32 0.0, %v207
    %v209 = vpop.f32.mrf.mxu0
    %v210 = vadd.f32 0.0, %v209
    %211 = vdwg.mxu0
    %v214 = vcombine.low %v208, %v210
    %v216 = vunpack.c.l.s4 1966171168
    %v217 = vunpack.c.0.s8 %v216
    %v218 = vlaneseq
    %v219 = vshrl.u32 %v218, 7
    %v220 = vsub.s32 %v217, %v219
    %v221 = vrot.slane %v214, %v220
    %v223 = vunpack.c.l.s4 1966171168
    %v224 = vunpack.c.0.s8 %v223
    %v225 = vlaneseq
    %v226 = vshrl.u32 %v225, 7
    %v227 = vsub.s32 %v224, %v226
    %v228 = vrot.slane %v221, %v227
    %s230 = scalar_lea.vmem [#allocation5], 2
    %231 = vst.msk [vmem:[%s230] sm:$0x3] %vm131, %v228
    // Predicated region
    $region14: #{tpu_custom_call.1} parent=1 // pred_check
      _
    $region15: #{tpu_custom_call.1} parent=1 // pred_check_branch
      %233 = sbr.rel (0) target = $region17
    $region16: #{tpu_custom_call.1} parent=1 // pred_region
      %s235 = ssub.s32 64, 64
      %236 = vsyncadd [#allocation4], %s235
      %s237 = sshll.u32 [#allocation5], 4
      %s238 = int_to_ptr.vmem [resolvable:$true] %s237
      %243 = dma.vmem_to_hbm [thread:$0]  %s238, 64, %s2, [#allocation4], 32, 32, 2
    $region17: #{tpu_custom_call.1} parent=1 // pred_fallthru
      _
    // Predicated region
    $region18: #{tpu_custom_call.1} parent=1 // pred_check
      _
    $region19: #{tpu_custom_call.1} parent=1 // pred_check_branch
      %245 = sbr.rel (0) target = $region21
    $region20: #{tpu_custom_call.1} parent=1 // pred_region
      %246 = dma.done [#allocation4], 64
    $region21: #{tpu_custom_call.1} parent=1 // pred_fallthru
      _
    %247 = vsyncpa [#allocation3], 1
    %248 = vsyncpa [#allocation4], 1

</llo_original>
